<compile_context>
chip_gen: v7x
topology: tpu7x:2x2x1
jax: 0.10.0
libtpu: 0.0.40
codegen_flags: <defaults>
</compile_context>

<pallas_src>
import jax
import jax.numpy as jnp
from jax.experimental import pallas as pl
from jax.experimental.pallas import tpu as pltpu


def lstm_seq_kernel(x_ref, wih_ref, whh_ref, b_ref, wlin_ref, blin_ref, o_ref,
                    pre_ref, hall_ref):
    """Full LSTMCell recurrence + linear head over the sequence.

    x_ref    : (T, B)      time-major input (scalar feature per step)
    wih_ref  : (1, 4H)     input->gates weights, compact i|f|g|o packing
    whh_ref  : (H, 4H)     hidden->gates weights (= w_hh.T), compact packing
    b_ref    : (1, 4H)     combined bias (b_ih + b_hh), compact packing
    wlin_ref : (1, H)      linear head weight
    blin_ref : (1, 1) SMEM linear head bias (scalar)
    o_ref    : (T, B)      outputs (time-major; transposed back outside)
    pre_ref  : (T, B, 4H)  VMEM scratch: hoisted input projection + bias
    hall_ref : (T, B, H)   VMEM scratch: hidden state of every step
    """
    T, B = x_ref.shape
    H4 = whh_ref.shape[1]
    H = H4 // 4

    wih = wih_ref[...]                       # (1, 4H)
    bias = b_ref[...]                        # (1, 4H)
    whh = whh_ref[...]                       # (H, 4H) — only 4 vregs, keep resident

    # (1) Hoist the input projection + bias out of the recurrence: one
    #     vectorized pass over all T steps -> (T, B, 4H).
    pre_ref[...] = x_ref[...][:, :, None] * wih[None, :, :] + bias[None, :, :]

    # (2) Serial recurrence (critical path).  Per step: one (B,H)x(H,4H) MXU
    #     dot, two full-vreg transcendental passes + one tanh(c), and the
    #     elementwise cell update.  T is static and small -> fully unroll.
    h = jnp.zeros((B, H), jnp.float32)
    c = jnp.zeros((B, H), jnp.float32)
    for t in range(T):
        gates = pre_ref[t] + jnp.dot(h, whh, preferred_element_type=jnp.float32)
        # One EUP pass covering all three sigmoid gates (sigmoid == 0.5*tanh(0.5x)+0.5),
        # one EUP pass for the tanh gate.
        sig = 0.5 * jnp.tanh(0.5 * gates) + 0.5
        tng = jnp.tanh(gates)
        # PyTorch LSTMCell gate order: i, f, g, o (compact H-wide lane slices).
        i_g = sig[:, 0 * H:1 * H]
        f_g = sig[:, 1 * H:2 * H]
        g_g = tng[:, 2 * H:3 * H]
        o_g = sig[:, 3 * H:4 * H]
        c = f_g * c + i_g * g_g
        h = o_g * jnp.tanh(c)
        hall_ref[t] = h

    # (3) Linear head once, after the loop, over all timesteps at once.
    wlin = wlin_ref[...]                                          # (1, H)
    head = jnp.sum(hall_ref[...] * wlin[None, :, :], axis=-1)     # (T, B)
    o_ref[...] = head + blin_ref[0, 0]

    # TODO(synk): the `future`/`y` autoregressive branch uses Python
    # random.random() teacher forcing (stochastic); only the default forward
    # (future=0) is implemented here.


def lstm_forward(x, w_ih, w_hh, b_ih, b_hh, w_lin, b_lin):
    """x: (B, T) f32.  Weight shapes follow torch.nn.LSTMCell / nn.Linear with
    input_size=1, output_size=1."""
    B, T = x.shape
    four_h, in_sz = w_ih.shape
    H = four_h // 4
    assert in_sz == 1, "model forward implies input_size == 1"
    f32 = jnp.float32

    # --- glue: compact, padding-free parameter layout (native i|f|g|o order) ---
    wih_p = w_ih.reshape(1, four_h).astype(f32)            # (1, 4H)
    whh_p = w_hh.T.astype(f32)                             # (H, 4H)
    bias_p = (b_ih + b_hh).reshape(1, four_h).astype(f32)  # (1, 4H)
    wlin_p = w_lin.astype(f32)                              # (1, H)
    blin_p = b_lin.reshape(1, 1).astype(f32)                # (1, 1)

    x_tb = x.T.astype(f32)                 # (T, B): contiguous per-step blocks

    vmem = pl.BlockSpec(memory_space=pltpu.MemorySpace.VMEM)
    smem = pl.BlockSpec(memory_space=pltpu.MemorySpace.SMEM)

    out_tb = pl.pallas_call(
        lstm_seq_kernel,
        out_shape=jax.ShapeDtypeStruct((T, B), f32),
        in_specs=[vmem, vmem, vmem, vmem, vmem, smem],
        out_specs=vmem,
        scratch_shapes=[pltpu.VMEM((T, B, four_h), f32),
                        pltpu.VMEM((T, B, H), f32)],
    )(x_tb, wih_p, whh_p, bias_p, wlin_p, blin_p)
    return out_tb.T                        # back to (B, T)


def lstm_forward_ref(x, w_ih, w_hh, b_ih, b_hh, w_lin, b_lin):
    """Pure-JAX reference mirroring the PyTorch forward (future=0)."""
    B, T = x.shape
    H = w_hh.shape[1]
    h = jnp.zeros((B, H), jnp.float32)
    c = jnp.zeros((B, H), jnp.float32)
    outs = []
    for t in range(T):
        x_t = x[:, t:t + 1]
        gates = x_t @ w_ih.T + h @ w_hh.T + b_ih + b_hh
        i_g = jax.nn.sigmoid(gates[:, 0:H])
        f_g = jax.nn.sigmoid(gates[:, H:2 * H])
        g_g = jnp.tanh(gates[:, 2 * H:3 * H])
        o_g = jax.nn.sigmoid(gates[:, 3 * H:4 * H])
        c = f_g * c + i_g * g_g
        h = o_g * jnp.tanh(c)
        outs.append(h @ w_lin.T + b_lin)
    return jnp.stack(outs, axis=1)[..., 0]


if __name__ == "__main__":
    # Model hyperparameters (input_size=1, output_size=1 as the forward implies)
    INPUT_SIZE, HIDDEN_SIZE, OUTPUT_SIZE = 1, 32, 1
    B, T = 8, 8

    key = jax.random.PRNGKey(0)
    k = jax.random.split(key, 7)
    scale = 1.0 / jnp.sqrt(HIDDEN_SIZE)
    w_ih = jax.random.uniform(k[0], (4 * HIDDEN_SIZE, INPUT_SIZE),
                              minval=-scale, maxval=scale, dtype=jnp.float32)
    w_hh = jax.random.uniform(k[1], (4 * HIDDEN_SIZE, HIDDEN_SIZE),
                              minval=-scale, maxval=scale, dtype=jnp.float32)
    b_ih = jax.random.uniform(k[2], (4 * HIDDEN_SIZE,),
                              minval=-scale, maxval=scale, dtype=jnp.float32)
    b_hh = jax.random.uniform(k[3], (4 * HIDDEN_SIZE,),
                              minval=-scale, maxval=scale, dtype=jnp.float32)
    w_lin = jax.random.uniform(k[4], (OUTPUT_SIZE, HIDDEN_SIZE),
                               minval=-scale, maxval=scale, dtype=jnp.float32)
    b_lin = jax.random.uniform(k[5], (OUTPUT_SIZE,),
                               minval=-scale, maxval=scale, dtype=jnp.float32)

    x = jax.random.normal(k[6], (B, T), dtype=jnp.float32)

    lstm_forward_jit = jax.jit(lstm_forward)   # fuse the (tiny) glue off the hot path
    out = lstm_forward_jit(x, w_ih, w_hh, b_ih, b_hh, w_lin, b_lin)
    out = jax.block_until_ready(out)

    ref = lstm_forward_ref(x, w_ih, w_hh, b_ih, b_hh, w_lin, b_lin)
    assert out.shape == (B, T)
    assert jnp.allclose(out, ref, atol=1e-4, rtol=1e-4), (
        f"max err {jnp.max(jnp.abs(out - ref))}")

    print("KERNEL_OK")
</pallas_src>

<mosaic_0001>
module attributes {stable_mosaic.version = 11 : i64} {
  func.func @lstm_seq_kernel(%arg0: memref<8x8xf32, #tpu.memory_space<vmem>>, %arg1: memref<1x128xf32, #tpu.memory_space<vmem>>, %arg2: memref<32x128xf32, #tpu.memory_space<vmem>>, %arg3: memref<1x128xf32, #tpu.memory_space<vmem>>, %arg4: memref<1x32xf32, #tpu.memory_space<vmem>>, %arg5: memref<1x1xf32, #tpu.memory_space<smem>>, %arg6: memref<8x8xf32, #tpu.memory_space<vmem>>, %arg7: memref<8x8x128xf32, #tpu.memory_space<vmem>>, %arg8: memref<8x8x32xf32, #tpu.memory_space<vmem>>) attributes {dimension_semantics = [], scalar_prefetch = 0 : i64, scratch_operands = 2 : i64, tpu.core_type = #tpu.core_type<tc>} {
    %c0 = arith.constant 0 : index
    %c0_0 = arith.constant 0 : index
    %0 = vector.load %arg1[%c0, %c0_0] : memref<1x128xf32, #tpu.memory_space<vmem>>, vector<1x128xf32>
    %c0_1 = arith.constant 0 : index
    %c0_2 = arith.constant 0 : index
    %1 = vector.load %arg3[%c0_1, %c0_2] : memref<1x128xf32, #tpu.memory_space<vmem>>, vector<1x128xf32>
    %c0_3 = arith.constant 0 : index
    %c0_4 = arith.constant 0 : index
    %2 = vector.load %arg2[%c0_3, %c0_4] : memref<32x128xf32, #tpu.memory_space<vmem>>, vector<32x128xf32>
    %c0_5 = arith.constant 0 : index
    %c0_6 = arith.constant 0 : index
    %3 = vector.load %arg0[%c0_5, %c0_6] : memref<8x8xf32, #tpu.memory_space<vmem>>, vector<8x8xf32>
    %4 = vector.shape_cast %3 : vector<8x8xf32> to vector<8x8x1xf32>
    %5 = vector.shape_cast %0 : vector<1x128xf32> to vector<1x1x128xf32>
    %6 = vector.broadcast %4 : vector<8x8x1xf32> to vector<8x8x128xf32>
    %7 = vector.broadcast %5 : vector<1x1x128xf32> to vector<8x8x128xf32>
    %8 = arith.mulf %6, %7 : vector<8x8x128xf32>
    %9 = vector.shape_cast %1 : vector<1x128xf32> to vector<1x1x128xf32>
    %10 = vector.broadcast %9 : vector<1x1x128xf32> to vector<8x8x128xf32>
    %11 = arith.addf %8, %10 : vector<8x8x128xf32>
    %c0_7 = arith.constant 0 : index
    %c0_8 = arith.constant 0 : index
    %c0_9 = arith.constant 0 : index
    %12 = vector.load %arg7[%c0_7, %c0_8, %c0_9] : memref<8x8x128xf32, #tpu.memory_space<vmem>>, vector<8x8x128xf32>
    tpu.vector_store %arg7[%c0_7, %c0_8, %c0_9], %11 {strides = array<i32>} : memref<8x8x128xf32, #tpu.memory_space<vmem>>, vector<8x8x128xf32>,
    %cst = arith.constant 0.000000e+00 : f32
    %13 = vector.broadcast %cst : f32 to vector<8x32xf32>
    %cst_10 = arith.constant 0.000000e+00 : f32
    %14 = vector.broadcast %cst_10 : f32 to vector<8x32xf32>
    %c0_11 = arith.constant 0 : index
    %c0_12 = arith.constant 0 : index
    %c0_13 = arith.constant 0 : index
    %15 = vector.load %arg7[%c0_11, %c0_12, %c0_13] : memref<8x8x128xf32, #tpu.memory_space<vmem>>, vector<1x8x128xf32>
    %16 = vector.shape_cast %15 : vector<1x8x128xf32> to vector<8x128xf32>
    %cst_14 = arith.constant dense<0.000000e+00> : vector<8x128xf32>
    %17 = tpu.matmul %13, %2, %cst_14 {dimension_numbers = #tpu.dot_dimension_numbers<[1], [0], [0], [1], [0, 0, 1, 1], [], []>} : vector<8x32xf32>, vector<32x128xf32>, vector<8x128xf32> -> vector<8x128xf32>
    %18 = arith.addf %16, %17 : vector<8x128xf32>
    %cst_15 = arith.constant 5.000000e-01 : f32
    %19 = vector.broadcast %cst_15 : f32 to vector<8x128xf32>
    %20 = arith.mulf %19, %18 : vector<8x128xf32>
    %21 = math.tanh %20 : vector<8x128xf32>
    %cst_16 = arith.constant 5.000000e-01 : f32
    %22 = vector.broadcast %cst_16 : f32 to vector<8x128xf32>
    %23 = arith.mulf %22, %21 : vector<8x128xf32>
    %cst_17 = arith.constant 5.000000e-01 : f32
    %24 = vector.broadcast %cst_17 : f32 to vector<8x128xf32>
    %25 = arith.addf %23, %24 : vector<8x128xf32>
    %26 = math.tanh %18 : vector<8x128xf32>
    %27 = vector.extract_strided_slice %25 {offsets = [0, 0], sizes = [8, 32], strides = [1, 1]} : vector<8x128xf32> to vector<8x32xf32>
    %28 = vector.extract_strided_slice %25 {offsets = [0, 32], sizes = [8, 32], strides = [1, 1]} : vector<8x128xf32> to vector<8x32xf32>
    %29 = vector.extract_strided_slice %26 {offsets = [0, 64], sizes = [8, 32], strides = [1, 1]} : vector<8x128xf32> to vector<8x32xf32>
    %30 = vector.extract_strided_slice %25 {offsets = [0, 96], sizes = [8, 32], strides = [1, 1]} : vector<8x128xf32> to vector<8x32xf32>
    %31 = arith.mulf %28, %14 : vector<8x32xf32>
    %32 = arith.mulf %27, %29 : vector<8x32xf32>
    %33 = arith.addf %31, %32 : vector<8x32xf32>
    %34 = math.tanh %33 : vector<8x32xf32>
    %35 = arith.mulf %30, %34 : vector<8x32xf32>
    %c0_18 = arith.constant 0 : index
    %c0_19 = arith.constant 0 : index
    %c0_20 = arith.constant 0 : index
    %36 = vector.load %arg8[%c0_18, %c0_19, %c0_20] : memref<8x8x32xf32, #tpu.memory_space<vmem>>, vector<1x8x32xf32>
    %37 = vector.shape_cast %36 : vector<1x8x32xf32> to vector<8x32xf32>
    %38 = vector.shape_cast %35 : vector<8x32xf32> to vector<1x8x32xf32>
    tpu.vector_store %arg8[%c0_18, %c0_19, %c0_20], %38 {strides = array<i32>} : memref<8x8x32xf32, #tpu.memory_space<vmem>>, vector<1x8x32xf32>,
    %c1 = arith.constant 1 : index
    %c0_21 = arith.constant 0 : index
    %c0_22 = arith.constant 0 : index
    %39 = vector.load %arg7[%c1, %c0_21, %c0_22] : memref<8x8x128xf32, #tpu.memory_space<vmem>>, vector<1x8x128xf32>
    %40 = vector.shape_cast %39 : vector<1x8x128xf32> to vector<8x128xf32>
    %cst_23 = arith.constant dense<0.000000e+00> : vector<8x128xf32>
    %41 = tpu.matmul %35, %2, %cst_23 {dimension_numbers = #tpu.dot_dimension_numbers<[1], [0], [0], [1], [0, 0, 1, 1], [], []>} : vector<8x32xf32>, vector<32x128xf32>, vector<8x128xf32> -> vector<8x128xf32>
    %42 = arith.addf %40, %41 : vector<8x128xf32>
    %cst_24 = arith.constant 5.000000e-01 : f32
    %43 = vector.broadcast %cst_24 : f32 to vector<8x128xf32>
    %44 = arith.mulf %43, %42 : vector<8x128xf32>
    %45 = math.tanh %44 : vector<8x128xf32>
    %cst_25 = arith.constant 5.000000e-01 : f32
    %46 = vector.broadcast %cst_25 : f32 to vector<8x128xf32>
    %47 = arith.mulf %46, %45 : vector<8x128xf32>
    %cst_26 = arith.constant 5.000000e-01 : f32
    %48 = vector.broadcast %cst_26 : f32 to vector<8x128xf32>
    %49 = arith.addf %47, %48 : vector<8x128xf32>
    %50 = math.tanh %42 : vector<8x128xf32>
    %51 = vector.extract_strided_slice %49 {offsets = [0, 0], sizes = [8, 32], strides = [1, 1]} : vector<8x128xf32> to vector<8x32xf32>
    %52 = vector.extract_strided_slice %49 {offsets = [0, 32], sizes = [8, 32], strides = [1, 1]} : vector<8x128xf32> to vector<8x32xf32>
    %53 = vector.extract_strided_slice %50 {offsets = [0, 64], sizes = [8, 32], strides = [1, 1]} : vector<8x128xf32> to vector<8x32xf32>
    %54 = vector.extract_strided_slice %49 {offsets = [0, 96], sizes = [8, 32], strides = [1, 1]} : vector<8x128xf32> to vector<8x32xf32>
    %55 = arith.mulf %52, %33 : vector<8x32xf32>
    %56 = arith.mulf %51, %53 : vector<8x32xf32>
    %57 = arith.addf %55, %56 : vector<8x32xf32>
    %58 = math.tanh %57 : vector<8x32xf32>
    %59 = arith.mulf %54, %58 : vector<8x32xf32>
    %c1_27 = arith.constant 1 : index
    %c0_28 = arith.constant 0 : index
    %c0_29 = arith.constant 0 : index
    %60 = vector.load %arg8[%c1_27, %c0_28, %c0_29] : memref<8x8x32xf32, #tpu.memory_space<vmem>>, vector<1x8x32xf32>
    %61 = vector.shape_cast %60 : vector<1x8x32xf32> to vector<8x32xf32>
    %62 = vector.shape_cast %59 : vector<8x32xf32> to vector<1x8x32xf32>
    tpu.vector_store %arg8[%c1_27, %c0_28, %c0_29], %62 {strides = array<i32>} : memref<8x8x32xf32, #tpu.memory_space<vmem>>, vector<1x8x32xf32>,
    %c2 = arith.constant 2 : index
    %c0_30 = arith.constant 0 : index
    %c0_31 = arith.constant 0 : index
    %63 = vector.load %arg7[%c2, %c0_30, %c0_31] : memref<8x8x128xf32, #tpu.memory_space<vmem>>, vector<1x8x128xf32>
    %64 = vector.shape_cast %63 : vector<1x8x128xf32> to vector<8x128xf32>
    %cst_32 = arith.constant dense<0.000000e+00> : vector<8x128xf32>
    %65 = tpu.matmul %59, %2, %cst_32 {dimension_numbers = #tpu.dot_dimension_numbers<[1], [0], [0], [1], [0, 0, 1, 1], [], []>} : vector<8x32xf32>, vector<32x128xf32>, vector<8x128xf32> -> vector<8x128xf32>
    %66 = arith.addf %64, %65 : vector<8x128xf32>
    %cst_33 = arith.constant 5.000000e-01 : f32
    %67 = vector.broadcast %cst_33 : f32 to vector<8x128xf32>
    %68 = arith.mulf %67, %66 : vector<8x128xf32>
    %69 = math.tanh %68 : vector<8x128xf32>
    %cst_34 = arith.constant 5.000000e-01 : f32
    %70 = vector.broadcast %cst_34 : f32 to vector<8x128xf32>
    %71 = arith.mulf %70, %69 : vector<8x128xf32>
    %cst_35 = arith.constant 5.000000e-01 : f32
    %72 = vector.broadcast %cst_35 : f32 to vector<8x128xf32>
    %73 = arith.addf %71, %72 : vector<8x128xf32>
    %74 = math.tanh %66 : vector<8x128xf32>
    %75 = vector.extract_strided_slice %73 {offsets = [0, 0], sizes = [8, 32], strides = [1, 1]} : vector<8x128xf32> to vector<8x32xf32>
    %76 = vector.extract_strided_slice %73 {offsets = [0, 32], sizes = [8, 32], strides = [1, 1]} : vector<8x128xf32> to vector<8x32xf32>
    %77 = vector.extract_strided_slice %74 {offsets = [0, 64], sizes = [8, 32], strides = [1, 1]} : vector<8x128xf32> to vector<8x32xf32>
    %78 = vector.extract_strided_slice %73 {offsets = [0, 96], sizes = [8, 32], strides = [1, 1]} : vector<8x128xf32> to vector<8x32xf32>
    %79 = arith.mulf %76, %57 : vector<8x32xf32>
    %80 = arith.mulf %75, %77 : vector<8x32xf32>
    %81 = arith.addf %79, %80 : vector<8x32xf32>
    %82 = math.tanh %81 : vector<8x32xf32>
    %83 = arith.mulf %78, %82 : vector<8x32xf32>
    %c2_36 = arith.constant 2 : index
    %c0_37 = arith.constant 0 : index
    %c0_38 = arith.constant 0 : index
    %84 = vector.load %arg8[%c2_36, %c0_37, %c0_38] : memref<8x8x32xf32, #tpu.memory_space<vmem>>, vector<1x8x32xf32>
    %85 = vector.shape_cast %84 : vector<1x8x32xf32> to vector<8x32xf32>
    %86 = vector.shape_cast %83 : vector<8x32xf32> to vector<1x8x32xf32>
    tpu.vector_store %arg8[%c2_36, %c0_37, %c0_38], %86 {strides = array<i32>} : memref<8x8x32xf32, #tpu.memory_space<vmem>>, vector<1x8x32xf32>,
    %c3 = arith.constant 3 : index
    %c0_39 = arith.constant 0 : index
    %c0_40 = arith.constant 0 : index
    %87 = vector.load %arg7[%c3, %c0_39, %c0_40] : memref<8x8x128xf32, #tpu.memory_space<vmem>>, vector<1x8x128xf32>
    %88 = vector.shape_cast %87 : vector<1x8x128xf32> to vector<8x128xf32>
    %cst_41 = arith.constant dense<0.000000e+00> : vector<8x128xf32>
    %89 = tpu.matmul %83, %2, %cst_41 {dimension_numbers = #tpu.dot_dimension_numbers<[1], [0], [0], [1], [0, 0, 1, 1], [], []>} : vector<8x32xf32>, vector<32x128xf32>, vector<8x128xf32> -> vector<8x128xf32>
    %90 = arith.addf %88, %89 : vector<8x128xf32>
    %cst_42 = arith.constant 5.000000e-01 : f32
    %91 = vector.broadcast %cst_42 : f32 to vector<8x128xf32>
    %92 = arith.mulf %91, %90 : vector<8x128xf32>
    %93 = math.tanh %92 : vector<8x128xf32>
    %cst_43 = arith.constant 5.000000e-01 : f32
    %94 = vector.broadcast %cst_43 : f32 to vector<8x128xf32>
    %95 = arith.mulf %94, %93 : vector<8x128xf32>
    %cst_44 = arith.constant 5.000000e-01 : f32
    %96 = vector.broadcast %cst_44 : f32 to vector<8x128xf32>
    %97 = arith.addf %95, %96 : vector<8x128xf32>
    %98 = math.tanh %90 : vector<8x128xf32>
    %99 = vector.extract_strided_slice %97 {offsets = [0, 0], sizes = [8, 32], strides = [1, 1]} : vector<8x128xf32> to vector<8x32xf32>
    %100 = vector.extract_strided_slice %97 {offsets = [0, 32], sizes = [8, 32], strides = [1, 1]} : vector<8x128xf32> to vector<8x32xf32>
    %101 = vector.extract_strided_slice %98 {offsets = [0, 64], sizes = [8, 32], strides = [1, 1]} : vector<8x128xf32> to vector<8x32xf32>
    %102 = vector.extract_strided_slice %97 {offsets = [0, 96], sizes = [8, 32], strides = [1, 1]} : vector<8x128xf32> to vector<8x32xf32>
    %103 = arith.mulf %100, %81 : vector<8x32xf32>
    %104 = arith.mulf %99, %101 : vector<8x32xf32>
    %105 = arith.addf %103, %104 : vector<8x32xf32>
    %106 = math.tanh %105 : vector<8x32xf32>
    %107 = arith.mulf %102, %106 : vector<8x32xf32>
    %c3_45 = arith.constant 3 : index
    %c0_46 = arith.constant 0 : index
    %c0_47 = arith.constant 0 : index
    %108 = vector.load %arg8[%c3_45, %c0_46, %c0_47] : memref<8x8x32xf32, #tpu.memory_space<vmem>>, vector<1x8x32xf32>
    %109 = vector.shape_cast %108 : vector<1x8x32xf32> to vector<8x32xf32>
    %110 = vector.shape_cast %107 : vector<8x32xf32> to vector<1x8x32xf32>
    tpu.vector_store %arg8[%c3_45, %c0_46, %c0_47], %110 {strides = array<i32>} : memref<8x8x32xf32, #tpu.memory_space<vmem>>, vector<1x8x32xf32>,
    %c4 = arith.constant 4 : index
    %c0_48 = arith.constant 0 : index
    %c0_49 = arith.constant 0 : index
    %111 = vector.load %arg7[%c4, %c0_48, %c0_49] : memref<8x8x128xf32, #tpu.memory_space<vmem>>, vector<1x8x128xf32>
    %112 = vector.shape_cast %111 : vector<1x8x128xf32> to vector<8x128xf32>
    %cst_50 = arith.constant dense<0.000000e+00> : vector<8x128xf32>
    %113 = tpu.matmul %107, %2, %cst_50 {dimension_numbers = #tpu.dot_dimension_numbers<[1], [0], [0], [1], [0, 0, 1, 1], [], []>} : vector<8x32xf32>, vector<32x128xf32>, vector<8x128xf32> -> vector<8x128xf32>
    %114 = arith.addf %112, %113 : vector<8x128xf32>
    %cst_51 = arith.constant 5.000000e-01 : f32
    %115 = vector.broadcast %cst_51 : f32 to vector<8x128xf32>
    %116 = arith.mulf %115, %114 : vector<8x128xf32>
    %117 = math.tanh %116 : vector<8x128xf32>
    %cst_52 = arith.constant 5.000000e-01 : f32
    %118 = vector.broadcast %cst_52 : f32 to vector<8x128xf32>
    %119 = arith.mulf %118, %117 : vector<8x128xf32>
    %cst_53 = arith.constant 5.000000e-01 : f32
    %120 = vector.broadcast %cst_53 : f32 to vector<8x128xf32>
    %121 = arith.addf %119, %120 : vector<8x128xf32>
    %122 = math.tanh %114 : vector<8x128xf32>
    %123 = vector.extract_strided_slice %121 {offsets = [0, 0], sizes = [8, 32], strides = [1, 1]} : vector<8x128xf32> to vector<8x32xf32>
    %124 = vector.extract_strided_slice %121 {offsets = [0, 32], sizes = [8, 32], strides = [1, 1]} : vector<8x128xf32> to vector<8x32xf32>
    %125 = vector.extract_strided_slice %122 {offsets = [0, 64], sizes = [8, 32], strides = [1, 1]} : vector<8x128xf32> to vector<8x32xf32>
    %126 = vector.extract_strided_slice %121 {offsets = [0, 96], sizes = [8, 32], strides = [1, 1]} : vector<8x128xf32> to vector<8x32xf32>
    %127 = arith.mulf %124, %105 : vector<8x32xf32>
    %128 = arith.mulf %123, %125 : vector<8x32xf32>
    %129 = arith.addf %127, %128 : vector<8x32xf32>
    %130 = math.tanh %129 : vector<8x32xf32>
    %131 = arith.mulf %126, %130 : vector<8x32xf32>
    %c4_54 = arith.constant 4 : index
    %c0_55 = arith.constant 0 : index
    %c0_56 = arith.constant 0 : index
    %132 = vector.load %arg8[%c4_54, %c0_55, %c0_56] : memref<8x8x32xf32, #tpu.memory_space<vmem>>, vector<1x8x32xf32>
    %133 = vector.shape_cast %132 : vector<1x8x32xf32> to vector<8x32xf32>
    %134 = vector.shape_cast %131 : vector<8x32xf32> to vector<1x8x32xf32>
    tpu.vector_store %arg8[%c4_54, %c0_55, %c0_56], %134 {strides = array<i32>} : memref<8x8x32xf32, #tpu.memory_space<vmem>>, vector<1x8x32xf32>,
    %c5 = arith.constant 5 : index
    %c0_57 = arith.constant 0 : index
    %c0_58 = arith.constant 0 : index
    %135 = vector.load %arg7[%c5, %c0_57, %c0_58] : memref<8x8x128xf32, #tpu.memory_space<vmem>>, vector<1x8x128xf32>
    %136 = vector.shape_cast %135 : vector<1x8x128xf32> to vector<8x128xf32>
    %cst_59 = arith.constant dense<0.000000e+00> : vector<8x128xf32>
    %137 = tpu.matmul %131, %2, %cst_59 {dimension_numbers = #tpu.dot_dimension_numbers<[1], [0], [0], [1], [0, 0, 1, 1], [], []>} : vector<8x32xf32>, vector<32x128xf32>, vector<8x128xf32> -> vector<8x128xf32>
    %138 = arith.addf %136, %137 : vector<8x128xf32>
    %cst_60 = arith.constant 5.000000e-01 : f32
    %139 = vector.broadcast %cst_60 : f32 to vector<8x128xf32>
    %140 = arith.mulf %139, %138 : vector<8x128xf32>
    %141 = math.tanh %140 : vector<8x128xf32>
    %cst_61 = arith.constant 5.000000e-01 : f32
    %142 = vector.broadcast %cst_61 : f32 to vector<8x128xf32>
    %143 = arith.mulf %142, %141 : vector<8x128xf32>
    %cst_62 = arith.constant 5.000000e-01 : f32
    %144 = vector.broadcast %cst_62 : f32 to vector<8x128xf32>
    %145 = arith.addf %143, %144 : vector<8x128xf32>
    %146 = math.tanh %138 : vector<8x128xf32>
    %147 = vector.extract_strided_slice %145 {offsets = [0, 0], sizes = [8, 32], strides = [1, 1]} : vector<8x128xf32> to vector<8x32xf32>
    %148 = vector.extract_strided_slice %145 {offsets = [0, 32], sizes = [8, 32], strides = [1, 1]} : vector<8x128xf32> to vector<8x32xf32>
    %149 = vector.extract_strided_slice %146 {offsets = [0, 64], sizes = [8, 32], strides = [1, 1]} : vector<8x128xf32> to vector<8x32xf32>
    %150 = vector.extract_strided_slice %145 {offsets = [0, 96], sizes = [8, 32], strides = [1, 1]} : vector<8x128xf32> to vector<8x32xf32>
    %151 = arith.mulf %148, %129 : vector<8x32xf32>
    %152 = arith.mulf %147, %149 : vector<8x32xf32>
    %153 = arith.addf %151, %152 : vector<8x32xf32>
    %154 = math.tanh %153 : vector<8x32xf32>
    %155 = arith.mulf %150, %154 : vector<8x32xf32>
    %c5_63 = arith.constant 5 : index
    %c0_64 = arith.constant 0 : index
    %c0_65 = arith.constant 0 : index
    %156 = vector.load %arg8[%c5_63, %c0_64, %c0_65] : memref<8x8x32xf32, #tpu.memory_space<vmem>>, vector<1x8x32xf32>
    %157 = vector.shape_cast %156 : vector<1x8x32xf32> to vector<8x32xf32>
    %158 = vector.shape_cast %155 : vector<8x32xf32> to vector<1x8x32xf32>
    tpu.vector_store %arg8[%c5_63, %c0_64, %c0_65], %158 {strides = array<i32>} : memref<8x8x32xf32, #tpu.memory_space<vmem>>, vector<1x8x32xf32>,
    %c6 = arith.constant 6 : index
    %c0_66 = arith.constant 0 : index
    %c0_67 = arith.constant 0 : index
    %159 = vector.load %arg7[%c6, %c0_66, %c0_67] : memref<8x8x128xf32, #tpu.memory_space<vmem>>, vector<1x8x128xf32>
    %160 = vector.shape_cast %159 : vector<1x8x128xf32> to vector<8x128xf32>
    %cst_68 = arith.constant dense<0.000000e+00> : vector<8x128xf32>
    %161 = tpu.matmul %155, %2, %cst_68 {dimension_numbers = #tpu.dot_dimension_numbers<[1], [0], [0], [1], [0, 0, 1, 1], [], []>} : vector<8x32xf32>, vector<32x128xf32>, vector<8x128xf32> -> vector<8x128xf32>
    %162 = arith.addf %160, %161 : vector<8x128xf32>
    %cst_69 = arith.constant 5.000000e-01 : f32
    %163 = vector.broadcast %cst_69 : f32 to vector<8x128xf32>
    %164 = arith.mulf %163, %162 : vector<8x128xf32>
    %165 = math.tanh %164 : vector<8x128xf32>
    %cst_70 = arith.constant 5.000000e-01 : f32
    %166 = vector.broadcast %cst_70 : f32 to vector<8x128xf32>
    %167 = arith.mulf %166, %165 : vector<8x128xf32>
    %cst_71 = arith.constant 5.000000e-01 : f32
    %168 = vector.broadcast %cst_71 : f32 to vector<8x128xf32>
    %169 = arith.addf %167, %168 : vector<8x128xf32>
    %170 = math.tanh %162 : vector<8x128xf32>
    %171 = vector.extract_strided_slice %169 {offsets = [0, 0], sizes = [8, 32], strides = [1, 1]} : vector<8x128xf32> to vector<8x32xf32>
    %172 = vector.extract_strided_slice %169 {offsets = [0, 32], sizes = [8, 32], strides = [1, 1]} : vector<8x128xf32> to vector<8x32xf32>
    %173 = vector.extract_strided_slice %170 {offsets = [0, 64], sizes = [8, 32], strides = [1, 1]} : vector<8x128xf32> to vector<8x32xf32>
    %174 = vector.extract_strided_slice %169 {offsets = [0, 96], sizes = [8, 32], strides = [1, 1]} : vector<8x128xf32> to vector<8x32xf32>
    %175 = arith.mulf %172, %153 : vector<8x32xf32>
    %176 = arith.mulf %171, %173 : vector<8x32xf32>
    %177 = arith.addf %175, %176 : vector<8x32xf32>
    %178 = math.tanh %177 : vector<8x32xf32>
    %179 = arith.mulf %174, %178 : vector<8x32xf32>
    %c6_72 = arith.constant 6 : index
    %c0_73 = arith.constant 0 : index
    %c0_74 = arith.constant 0 : index
    %180 = vector.load %arg8[%c6_72, %c0_73, %c0_74] : memref<8x8x32xf32, #tpu.memory_space<vmem>>, vector<1x8x32xf32>
    %181 = vector.shape_cast %180 : vector<1x8x32xf32> to vector<8x32xf32>
    %182 = vector.shape_cast %179 : vector<8x32xf32> to vector<1x8x32xf32>
    tpu.vector_store %arg8[%c6_72, %c0_73, %c0_74], %182 {strides = array<i32>} : memref<8x8x32xf32, #tpu.memory_space<vmem>>, vector<1x8x32xf32>,
    %c7 = arith.constant 7 : index
    %c0_75 = arith.constant 0 : index
    %c0_76 = arith.constant 0 : index
    %183 = vector.load %arg7[%c7, %c0_75, %c0_76] : memref<8x8x128xf32, #tpu.memory_space<vmem>>, vector<1x8x128xf32>
    %184 = vector.shape_cast %183 : vector<1x8x128xf32> to vector<8x128xf32>
    %cst_77 = arith.constant dense<0.000000e+00> : vector<8x128xf32>
    %185 = tpu.matmul %179, %2, %cst_77 {dimension_numbers = #tpu.dot_dimension_numbers<[1], [0], [0], [1], [0, 0, 1, 1], [], []>} : vector<8x32xf32>, vector<32x128xf32>, vector<8x128xf32> -> vector<8x128xf32>
    %186 = arith.addf %184, %185 : vector<8x128xf32>
    %cst_78 = arith.constant 5.000000e-01 : f32
    %187 = vector.broadcast %cst_78 : f32 to vector<8x128xf32>
    %188 = arith.mulf %187, %186 : vector<8x128xf32>
    %189 = math.tanh %188 : vector<8x128xf32>
    %cst_79 = arith.constant 5.000000e-01 : f32
    %190 = vector.broadcast %cst_79 : f32 to vector<8x128xf32>
    %191 = arith.mulf %190, %189 : vector<8x128xf32>
    %cst_80 = arith.constant 5.000000e-01 : f32
    %192 = vector.broadcast %cst_80 : f32 to vector<8x128xf32>
    %193 = arith.addf %191, %192 : vector<8x128xf32>
    %194 = math.tanh %186 : vector<8x128xf32>
    %195 = vector.extract_strided_slice %193 {offsets = [0, 0], sizes = [8, 32], strides = [1, 1]} : vector<8x128xf32> to vector<8x32xf32>
    %196 = vector.extract_strided_slice %193 {offsets = [0, 32], sizes = [8, 32], strides = [1, 1]} : vector<8x128xf32> to vector<8x32xf32>
    %197 = vector.extract_strided_slice %194 {offsets = [0, 64], sizes = [8, 32], strides = [1, 1]} : vector<8x128xf32> to vector<8x32xf32>
    %198 = vector.extract_strided_slice %193 {offsets = [0, 96], sizes = [8, 32], strides = [1, 1]} : vector<8x128xf32> to vector<8x32xf32>
    %199 = arith.mulf %196, %177 : vector<8x32xf32>
    %200 = arith.mulf %195, %197 : vector<8x32xf32>
    %201 = arith.addf %199, %200 : vector<8x32xf32>
    %202 = math.tanh %201 : vector<8x32xf32>
    %203 = arith.mulf %198, %202 : vector<8x32xf32>
    %c7_81 = arith.constant 7 : index
    %c0_82 = arith.constant 0 : index
    %c0_83 = arith.constant 0 : index
    %204 = vector.load %arg8[%c7_81, %c0_82, %c0_83] : memref<8x8x32xf32, #tpu.memory_space<vmem>>, vector<1x8x32xf32>
    %205 = vector.shape_cast %204 : vector<1x8x32xf32> to vector<8x32xf32>
    %206 = vector.shape_cast %203 : vector<8x32xf32> to vector<1x8x32xf32>
    tpu.vector_store %arg8[%c7_81, %c0_82, %c0_83], %206 {strides = array<i32>} : memref<8x8x32xf32, #tpu.memory_space<vmem>>, vector<1x8x32xf32>,
    %c0_84 = arith.constant 0 : index
    %c0_85 = arith.constant 0 : index
    %207 = vector.load %arg4[%c0_84, %c0_85] : memref<1x32xf32, #tpu.memory_space<vmem>>, vector<1x32xf32>
    %c0_86 = arith.constant 0 : index
    %c0_87 = arith.constant 0 : index
    %c0_88 = arith.constant 0 : index
    %208 = vector.load %arg8[%c0_86, %c0_87, %c0_88] : memref<8x8x32xf32, #tpu.memory_space<vmem>>, vector<8x8x32xf32>
    %209 = vector.shape_cast %207 : vector<1x32xf32> to vector<1x1x32xf32>
    %210 = vector.broadcast %209 : vector<1x1x32xf32> to vector<8x8x32xf32>
    %211 = arith.mulf %208, %210 : vector<8x8x32xf32>
    %cst_89 = arith.constant dense<0.000000e+00> : vector<8x8xf32>
    %212 = vector.multi_reduction <add>, %211, %cst_89 [2] : vector<8x8x32xf32> to vector<8x8xf32>
    %c0_90 = arith.constant 0 : index
    %c0_91 = arith.constant 0 : index
    %213 = memref.load %arg5[%c0_90, %c0_91] : memref<1x1xf32, #tpu.memory_space<smem>>
    %214 = vector.broadcast %213 : f32 to vector<8x8xf32>
    %215 = arith.addf %212, %214 : vector<8x8xf32>
    %c0_92 = arith.constant 0 : index
    %c0_93 = arith.constant 0 : index
    %216 = vector.load %arg6[%c0_92, %c0_93] : memref<8x8xf32, #tpu.memory_space<vmem>>, vector<8x8xf32>
    tpu.vector_store %arg6[%c0_92, %c0_93], %215 {strides = array<i32>} : memref<8x8xf32, #tpu.memory_space<vmem>>, vector<8x8xf32>,
    return
  }
}

</mosaic_0001>

<llo_original>
// kernel: lstm_forward.1
$region0: #{lstm_forward.1}
  #allocation0 [shape = 'u32[]', space=smem, size = 0x4, offset = 0x4, fixed_abs, tag = 'smem constant byte address 0x4 - core index']
  #allocation1 [shape = 'u32[144,128]{1,0:T(1,128)}', space=vmem, size = 0x12000, scoped, tag = 'internal scratch']
  #allocation2 [shape = 'f32[8,8,128]{2,1,0:T(8,128)}', space=vmem, size = 0x8000, scoped, tag = 'scratch operand']
  #allocation3 [shape = 'f32[8,8,32]{2,1,0:T(8,128)}', space=vmem, size = 0x8000, scoped, tag = 'scratch operand']
  #allocation4 [shape = 'f32[1,1]{1,0:T(1,128)S(6)}', space=smem, size = 0x200, scoped, tag = 'scoped memory for lstm_forward.1']
  %s0 = inlined_call_operand.vmem [shape: f32[8,8], index: 0, kind: input, shape index: {}]
  %s1 = inlined_call_operand.vmem [shape: f32[1,128], index: 1, kind: input, shape index: {}]
  %s2 = inlined_call_operand.vmem [shape: f32[32,128], index: 2, kind: input, shape index: {}]
  %s3 = inlined_call_operand.vmem [shape: f32[1,128], index: 3, kind: input, shape index: {}]
  %s4 = inlined_call_operand.vmem [shape: f32[1,32], index: 4, kind: input, shape index: {}]
  %s5 = inlined_call_operand.<no memory space> [shape: f32[1,1], index: 5, kind: input, shape index: {}]
  %s6 = inlined_call_operand.vmem [shape: f32[8,8], index: 6, kind: output, shape index: {}]
  %s7 = sld [smem:[#allocation0]]
  $region34: #{lstm_forward.1} parent=0
    _
  %s9 = ssub.s32 1, %s7
  %s10 = scalar_select 0, %s9, %s7
  %11 = sst [smem:[#allocation4]] %s5
  // Predicated region
  $region2: #{lstm_forward.1} parent=0 // pred_check
    _
  $region3: #{lstm_forward.1} parent=0 // pred_check_branch
    %13 = sbr.rel (0) target = $region5
  $region4: #{lstm_forward.1} parent=0 // pred_region
    _
  $region5: #{lstm_forward.1} parent=0 // pred_fallthru
    _
  // Predicated region
  $region6: #{lstm_forward.1} parent=0 // pred_check
    _
  $region7: #{lstm_forward.1} parent=0 // pred_check_branch
    %15 = sbr.rel (0) target = $region9
  $region8: #{lstm_forward.1} parent=0 // pred_region
    _
  $region9: #{lstm_forward.1} parent=0 // pred_fallthru
    _
  // Predicated region
  $region10: #{lstm_forward.1} parent=0 // pred_check
    _
  $region11: #{lstm_forward.1} parent=0 // pred_check_branch
    %17 = sbr.rel (0) target = $region13
  $region12: #{lstm_forward.1} parent=0 // pred_region
    _
  $region13: #{lstm_forward.1} parent=0 // pred_fallthru
    _
  // Predicated region
  $region14: #{lstm_forward.1} parent=0 // pred_check
    _
  $region15: #{lstm_forward.1} parent=0 // pred_check_branch
    %19 = sbr.rel (0) target = $region17
  $region16: #{lstm_forward.1} parent=0 // pred_region
    _
  $region17: #{lstm_forward.1} parent=0 // pred_fallthru
    _
  // Predicated region
  $region18: #{lstm_forward.1} parent=0 // pred_check
    _
  $region19: #{lstm_forward.1} parent=0 // pred_check_branch
    %21 = sbr.rel (0) target = $region21
  $region20: #{lstm_forward.1} parent=0 // pred_region
    _
  $region21: #{lstm_forward.1} parent=0 // pred_fallthru
    _
  // Predicated region
  $region22: #{lstm_forward.1} parent=0 // pred_check
    _
  $region23: #{lstm_forward.1} parent=0 // pred_check_branch
    %23 = sbr.rel (0) target = $region25
  $region24: #{lstm_forward.1} parent=0 // pred_region
    _
  $region25: #{lstm_forward.1} parent=0 // pred_fallthru
    _
  %v24 = vld [vmem:[%s1] sm:$0x1]
  %v25 = vld [vmem:[%s3] sm:$0x1]
  %v26 = vld [vmem:[%s2] sm:$0xff]
  %v27 = vld [vmem:[%s2 + $0x8] sm:$0xff]
  %v28 = vld [vmem:[%s2 + $0x10] sm:$0xff]
  %v29 = vld [vmem:[%s2 + $0x18] sm:$0xff]
  %v30 = vld [vmem:[%s0] sm:$0xff]
  %v31 = vlaneseq
  %v32 = vshrl.u32 %v31, 7
  %v33 = vsub.s32 0, %v32
  %v34 = vrot.slane %v30, %v33
  %36 = vbcast.lane.b32.xlu0 %v34, 256
  %v37 = vpop.permute.xlu0 %36
  %v38 = vlaneseq
  %v39 = vshrl.u32 %v38, 7
  %v40 = vsub.s32 1, %v39
  %v41 = vrot.slane %v30, %v40
  %43 = vbcast.lane.b32.xlu0 %v41, 256
  %v44 = vpop.permute.xlu0 %43
  %v45 = vlaneseq
  %v46 = vshrl.u32 %v45, 7
  %v47 = vsub.s32 2, %v46
  %v48 = vrot.slane %v30, %v47
  %50 = vbcast.lane.b32.xlu0 %v48, 256
  %v51 = vpop.permute.xlu0 %50
  %v52 = vlaneseq
  %v53 = vshrl.u32 %v52, 7
  %v54 = vsub.s32 3, %v53
  %v55 = vrot.slane %v30, %v54
  %57 = vbcast.lane.b32.xlu0 %v55, 256
  %v58 = vpop.permute.xlu0 %57
  %v59 = vlaneseq
  %v60 = vshrl.u32 %v59, 7
  %v61 = vsub.s32 4, %v60
  %v62 = vrot.slane %v30, %v61
  %64 = vbcast.lane.b32.xlu0 %v62, 256
  %v65 = vpop.permute.xlu0 %64
  %v66 = vlaneseq
  %v67 = vshrl.u32 %v66, 7
  %v68 = vsub.s32 5, %v67
  %v69 = vrot.slane %v30, %v68
  %71 = vbcast.lane.b32.xlu0 %v69, 256
  %v72 = vpop.permute.xlu0 %71
  %v73 = vlaneseq
  %v74 = vshrl.u32 %v73, 7
  %v75 = vsub.s32 6, %v74
  %v76 = vrot.slane %v30, %v75
  %78 = vbcast.lane.b32.xlu0 %v76, 256
  %v79 = vpop.permute.xlu0 %78
  %v80 = vlaneseq
  %v81 = vshrl.u32 %v80, 7
  %v82 = vsub.s32 7, %v81
  %v83 = vrot.slane %v30, %v82
  %85 = vbcast.lane.b32.xlu0 %v83, 256
  %v86 = vpop.permute.xlu0 %85
  %v88 = vlaneseq
  %v89 = vshrl.u32 %v88, 7
  %v90 = vsub.s32 0, %v89
  %v91 = vrot.slane %v24, %v90
  %v93 = vmul.f32 %v37, %v91
  %v94 = vmul.f32 %v44, %v91
  %v95 = vmul.f32 %v51, %v91
  %v96 = vmul.f32 %v58, %v91
  %v97 = vmul.f32 %v65, %v91
  %v98 = vmul.f32 %v72, %v91
  %v99 = vmul.f32 %v79, %v91
  %v100 = vmul.f32 %v86, %v91
  %v102 = vlaneseq
  %v103 = vshrl.u32 %v102, 7
  %v104 = vsub.s32 0, %v103
  %v105 = vrot.slane %v25, %v104
  %v107 = vadd.f32 %v93, %v105
  %v108 = vadd.f32 %v94, %v105
  %v109 = vadd.f32 %v95, %v105
  %v110 = vadd.f32 %v96, %v105
  %v111 = vadd.f32 %v97, %v105
  %v112 = vadd.f32 %v98, %v105
  %v113 = vadd.f32 %v99, %v105
  %v114 = vadd.f32 %v100, %v105
  %115 = vst [vmem:[#allocation2] sm:$0xff] %v107
  %116 = vst [vmem:[#allocation2 + $0x8] sm:$0xff] %v108
  %117 = vst [vmem:[#allocation2 + $0x10] sm:$0xff] %v109
  %118 = vst [vmem:[#allocation2 + $0x18] sm:$0xff] %v110
  %119 = vst [vmem:[#allocation2 + $0x20] sm:$0xff] %v111
  %120 = vst [vmem:[#allocation2 + $0x28] sm:$0xff] %v112
  %121 = vst [vmem:[#allocation2 + $0x30] sm:$0xff] %v113
  %122 = vst [vmem:[#allocation2 + $0x38] sm:$0xff] %v114
  %v123 = vld [vmem:[#allocation2] sm:$0xff]
  %vm124 = vcmask 261120
  %v126 = vsel %vm124, 0.0, 0
  %128 = vmatprep.subr.mxu0 0.0
  %129 = vmatpush1.msra.mxu0 %v26
  %130 = vmatprep.subr.mxu0 0.0
  %131 = vmatpush1.msra.mxu0 %v27
  %132 = vmatprep.subr.mxu0 0.0
  %133 = vmatpush1.msra.mxu0 %v28
  %134 = vmatprep.subr.mxu0 0.0
  %135 = vmatpush1.msra.mxu0 %v29
  %136 = vmatprep.subr.mxu0 0.0
  %137 = vmatpush1.msra.mxu0 0.0
  %138 = vmatprep.subr.mxu0 0.0
  %139 = vmatpush1.msra.mxu0 0.0
  %140 = vmatprep.subr.mxu0 0.0
  %141 = vmatpush1.msra.mxu0 0.0
  %142 = vmatprep.subr.mxu0 0.0
  %143 = vmatpush1.msra.mxu0 0.0
  %144 = vmatprep.subr.mxu0 0.0
  %145 = vmatpush1.msra.mxu0 0.0
  %146 = vmatprep.subr.mxu0 0.0
  %147 = vmatpush1.msra.mxu0 0.0
  %148 = vmatprep.subr.mxu0 0.0
  %149 = vmatpush1.msra.mxu0 0.0
  %150 = vmatprep.subr.mxu0 0.0
  %151 = vmatpush1.msra.mxu0 0.0
  %152 = vmatprep.subr.mxu0 0.0
  %153 = vmatpush1.msra.mxu0 0.0
  %154 = vmatprep.subr.mxu0 0.0
  %155 = vmatpush1.msra.mxu0 0.0
  %156 = vmatprep.subr.mxu0 0.0
  %157 = vmatpush1.msra.mxu0 0.0
  %158 = vmatprep.subr.mxu0 0.0
  %159 = vmatpush1.msra.mxu0 0.0
  %160 = vmatprep.subr.mxu0 0.0
  %161 = vmatpush1.msra.mxu0 0.0
  %162 = vmatprep.subr.mxu0 0.0
  %163 = vmatpush1.msra.mxu0 0.0
  %164 = vmatprep.subr.mxu0 0.0
  %165 = vmatpush1.msra.mxu0 0.0
  %166 = vmatprep.subr.mxu0 0.0
  %167 = vmatpush1.msra.mxu0 0.0
  %168 = vmatprep.subr.mxu0 0.0
  %169 = vmatpush1.msra.mxu0 0.0
  %170 = vmatprep.subr.mxu0 0.0
  %171 = vmatpush1.msra.mxu0 0.0
  %172 = vmatprep.subr.mxu0 0.0
  %173 = vmatpush1.msra.mxu0 0.0
  %174 = vmatprep.subr.mxu0 0.0
  %175 = vmatpush1.msra.mxu0 0.0
  %176 = vmatprep.subr.mxu0 0.0
  %177 = vmatpush1.msra.mxu0 0.0
  %178 = vmatprep.subr.mxu0 0.0
  %179 = vmatpush1.msra.mxu0 0.0
  %180 = vmatprep.subr.mxu0 0.0
  %181 = vmatpush1.msra.mxu0 0.0
  %182 = vmatprep.subr.mxu0 0.0
  %183 = vmatpush1.msra.mxu0 0.0
  %184 = vmatprep.subr.mxu0 0.0
  %185 = vmatpush1.msra.mxu0 0.0
  %186 = vmatprep.subr.mxu0 0.0
  %187 = vmatpush1.msra.mxu0 0.0
  %188 = vmatprep.subr.mxu0 0.0
  %189 = vmatpush1.msra.mxu0 0.0
  %190 = vmatprep.subr.mxu0 0.0
  %191 = vmatpush1.msra.mxu0 0.0
  %192 = vmatprep.mubr.f32.mxu0 0.0
  %193 = vmatmul.mubr.f32.gmra.mrb[0].mxu0 %v126
  %v194 = vpop.f32.mrb[0].mxu0
  %v195 = vadd.f32 0.0, %v194
  %v196 = vpop.f32.mrb[0].mxu0
  %197 = vdwg.mxu0
  %v198 = vadd.f32 %v123, %v195
  %v199 = vmul.f32 %v198, 0.5
  %v200 = vtanh.pop %v199
  %v201 = vmul.f32 %v200, 0.5
  %v202 = vadd.f32 %v201, 0.5
  %v203 = vtanh.pop %v198
  %v204 = vmul.f32 %v202, 0.0
  %206 = vrot.lane.b32.xlu0 %v203, 64
  %v207 = vpop.permute.xlu0 %206
  %v209 = vmul.f32 %v202, %v207
  %211 = vrot.lane.b32.xlu0 %v209, 32
  %v212 = vpop.permute.xlu0 %211
  %v214 = vadd.f32 %v204, %v212
  %v215 = vtanh.pop %v214
  %217 = vrot.lane.b32.xlu0 %v215, 64
  %v218 = vpop.permute.xlu0 %217
  %v220 = vmul.f32 %v202, %v218
  %222 = vrot.lane.b32.xlu0 %v220, 32
  %v223 = vpop.permute.xlu0 %222
  %225 = vst.msk [vmem:[#allocation3] sm:$0xff] %vm124, %v223
  %s226 = scalar_lea.vmem [#allocation2], 8
  %v227 = vld [vmem:[%s226] sm:$0xff]
  %v228 = vsel %vm124, %v223, 0
  %230 = vmatprep.subr.mxu0 0.0
  %231 = vmatpush1.msra.mxu0 %v26
  %232 = vmatprep.subr.mxu0 0.0
  %233 = vmatpush1.msra.mxu0 %v27
  %234 = vmatprep.subr.mxu0 0.0
  %235 = vmatpush1.msra.mxu0 %v28
  %236 = vmatprep.subr.mxu0 0.0
  %237 = vmatpush1.msra.mxu0 %v29
  %238 = vmatprep.subr.mxu0 0.0
  %239 = vmatpush1.msra.mxu0 0.0
  %240 = vmatprep.subr.mxu0 0.0
  %241 = vmatpush1.msra.mxu0 0.0
  %242 = vmatprep.subr.mxu0 0.0
  %243 = vmatpush1.msra.mxu0 0.0
  %244 = vmatprep.subr.mxu0 0.0
  %245 = vmatpush1.msra.mxu0 0.0
  %246 = vmatprep.subr.mxu0 0.0
  %247 = vmatpush1.msra.mxu0 0.0
  %248 = vmatprep.subr.mxu0 0.0
  %249 = vmatpush1.msra.mxu0 0.0
  %250 = vmatprep.subr.mxu0 0.0
  %251 = vmatpush1.msra.mxu0 0.0
  %252 = vmatprep.subr.mxu0 0.0
  %253 = vmatpush1.msra.mxu0 0.0
  %254 = vmatprep.subr.mxu0 0.0
  %255 = vmatpush1.msra.mxu0 0.0
  %256 = vmatprep.subr.mxu0 0.0
  %257 = vmatpush1.msra.mxu0 0.0
  %258 = vmatprep.subr.mxu0 0.0
  %259 = vmatpush1.msra.mxu0 0.0
  %260 = vmatprep.subr.mxu0 0.0
  %261 = vmatpush1.msra.mxu0 0.0
  %262 = vmatprep.subr.mxu0 0.0
  %263 = vmatpush1.msra.mxu0 0.0
  %264 = vmatprep.subr.mxu0 0.0
  %265 = vmatpush1.msra.mxu0 0.0
  %266 = vmatprep.subr.mxu0 0.0
  %267 = vmatpush1.msra.mxu0 0.0
  %268 = vmatprep.subr.mxu0 0.0
  %269 = vmatpush1.msra.mxu0 0.0
  %270 = vmatprep.subr.mxu0 0.0
  %271 = vmatpush1.msra.mxu0 0.0
  %272 = vmatprep.subr.mxu0 0.0
  %273 = vmatpush1.msra.mxu0 0.0
  %274 = vmatprep.subr.mxu0 0.0
  %275 = vmatpush1.msra.mxu0 0.0
  %276 = vmatprep.subr.mxu0 0.0
  %277 = vmatpush1.msra.mxu0 0.0
  %278 = vmatprep.subr.mxu0 0.0
  %279 = vmatpush1.msra.mxu0 0.0
  %280 = vmatprep.subr.mxu0 0.0
  %281 = vmatpush1.msra.mxu0 0.0
  %282 = vmatprep.subr.mxu0 0.0
  %283 = vmatpush1.msra.mxu0 0.0
  %284 = vmatprep.subr.mxu0 0.0
  %285 = vmatpush1.msra.mxu0 0.0
  %286 = vmatprep.subr.mxu0 0.0
  %287 = vmatpush1.msra.mxu0 0.0
  %288 = vmatprep.subr.mxu0 0.0
  %289 = vmatpush1.msra.mxu0 0.0
  %290 = vmatprep.subr.mxu0 0.0
  %291 = vmatpush1.msra.mxu0 0.0
  %292 = vmatprep.subr.mxu0 0.0
  %293 = vmatpush1.msra.mxu0 0.0
  %294 = vmatprep.mubr.f32.mxu0 0.0
  %295 = vmatmul.mubr.f32.gmra.mrb[0].mxu0 %v228
  %v296 = vpop.f32.mrb[0].mxu0
  %v297 = vadd.f32 0.0, %v296
  %v298 = vpop.f32.mrb[0].mxu0
  %299 = vdwg.mxu0
  %v300 = vadd.f32 %v227, %v297
  %v301 = vmul.f32 %v300, 0.5
  %v302 = vtanh.pop %v301
  %v303 = vmul.f32 %v302, 0.5
  %v304 = vadd.f32 %v303, 0.5
  %v305 = vtanh.pop %v300
  %v306 = vmul.f32 %v304, %v214
  %308 = vrot.lane.b32.xlu0 %v305, 64
  %v309 = vpop.permute.xlu0 %308
  %v311 = vmul.f32 %v304, %v309
  %313 = vrot.lane.b32.xlu0 %v311, 32
  %v314 = vpop.permute.xlu0 %313
  %v316 = vadd.f32 %v306, %v314
  %v317 = vtanh.pop %v316
  %319 = vrot.lane.b32.xlu0 %v317, 64
  %v320 = vpop.permute.xlu0 %319
  %v322 = vmul.f32 %v304, %v320
  %324 = vrot.lane.b32.xlu0 %v322, 32
  %v325 = vpop.permute.xlu0 %324
  %s327 = scalar_lea.vmem [#allocation3], 8
  %328 = vst.msk [vmem:[%s327] sm:$0xff] %vm124, %v325
  %s329 = scalar_lea.vmem [#allocation2], 16
  %v330 = vld [vmem:[%s329] sm:$0xff]
  %v331 = vsel %vm124, %v325, 0
  %333 = vmatprep.subr.mxu0 0.0
  %334 = vmatpush1.msra.mxu0 %v26
  %335 = vmatprep.subr.mxu0 0.0
  %336 = vmatpush1.msra.mxu0 %v27
  %337 = vmatprep.subr.mxu0 0.0
  %338 = vmatpush1.msra.mxu0 %v28
  %339 = vmatprep.subr.mxu0 0.0
  %340 = vmatpush1.msra.mxu0 %v29
  %341 = vmatprep.subr.mxu0 0.0
  %342 = vmatpush1.msra.mxu0 0.0
  %343 = vmatprep.subr.mxu0 0.0
  %344 = vmatpush1.msra.mxu0 0.0
  %345 = vmatprep.subr.mxu0 0.0
  %346 = vmatpush1.msra.mxu0 0.0
  %347 = vmatprep.subr.mxu0 0.0
  %348 = vmatpush1.msra.mxu0 0.0
  %349 = vmatprep.subr.mxu0 0.0
  %350 = vmatpush1.msra.mxu0 0.0
  %351 = vmatprep.subr.mxu0 0.0
  %352 = vmatpush1.msra.mxu0 0.0
  %353 = vmatprep.subr.mxu0 0.0
  %354 = vmatpush1.msra.mxu0 0.0
  %355 = vmatprep.subr.mxu0 0.0
  %356 = vmatpush1.msra.mxu0 0.0
  %357 = vmatprep.subr.mxu0 0.0
  %358 = vmatpush1.msra.mxu0 0.0
  %359 = vmatprep.subr.mxu0 0.0
  %360 = vmatpush1.msra.mxu0 0.0
  %361 = vmatprep.subr.mxu0 0.0
  %362 = vmatpush1.msra.mxu0 0.0
  %363 = vmatprep.subr.mxu0 0.0
  %364 = vmatpush1.msra.mxu0 0.0
  %365 = vmatprep.subr.mxu0 0.0
  %366 = vmatpush1.msra.mxu0 0.0
  %367 = vmatprep.subr.mxu0 0.0
  %368 = vmatpush1.msra.mxu0 0.0
  %369 = vmatprep.subr.mxu0 0.0
  %370 = vmatpush1.msra.mxu0 0.0
  %371 = vmatprep.subr.mxu0 0.0
  %372 = vmatpush1.msra.mxu0 0.0
  %373 = vmatprep.subr.mxu0 0.0
  %374 = vmatpush1.msra.mxu0 0.0
  %375 = vmatprep.subr.mxu0 0.0
  %376 = vmatpush1.msra.mxu0 0.0
  %377 = vmatprep.subr.mxu0 0.0
  %378 = vmatpush1.msra.mxu0 0.0
  %379 = vmatprep.subr.mxu0 0.0
  %380 = vmatpush1.msra.mxu0 0.0
  %381 = vmatprep.subr.mxu0 0.0
  %382 = vmatpush1.msra.mxu0 0.0
  %383 = vmatprep.subr.mxu0 0.0
  %384 = vmatpush1.msra.mxu0 0.0
  %385 = vmatprep.subr.mxu0 0.0
  %386 = vmatpush1.msra.mxu0 0.0
  %387 = vmatprep.subr.mxu0 0.0
  %388 = vmatpush1.msra.mxu0 0.0
  %389 = vmatprep.subr.mxu0 0.0
  %390 = vmatpush1.msra.mxu0 0.0
  %391 = vmatprep.subr.mxu0 0.0
  %392 = vmatpush1.msra.mxu0 0.0
  %393 = vmatprep.subr.mxu0 0.0
  %394 = vmatpush1.msra.mxu0 0.0
  %395 = vmatprep.subr.mxu0 0.0
  %396 = vmatpush1.msra.mxu0 0.0
  %397 = vmatprep.mubr.f32.mxu0 0.0
  %398 = vmatmul.mubr.f32.gmra.mrb[0].mxu0 %v331
  %v399 = vpop.f32.mrb[0].mxu0
  %v400 = vadd.f32 0.0, %v399
  %v401 = vpop.f32.mrb[0].mxu0
  %402 = vdwg.mxu0
  %v403 = vadd.f32 %v330, %v400
  %v404 = vmul.f32 %v403, 0.5
  %v405 = vtanh.pop %v404
  %v406 = vmul.f32 %v405, 0.5
  %v407 = vadd.f32 %v406, 0.5
  %v408 = vtanh.pop %v403
  %v409 = vmul.f32 %v407, %v316
  %411 = vrot.lane.b32.xlu0 %v408, 64
  %v412 = vpop.permute.xlu0 %411
  %v414 = vmul.f32 %v407, %v412
  %416 = vrot.lane.b32.xlu0 %v414, 32
  %v417 = vpop.permute.xlu0 %416
  %v419 = vadd.f32 %v409, %v417
  %v420 = vtanh.pop %v419
  %422 = vrot.lane.b32.xlu0 %v420, 64
  %v423 = vpop.permute.xlu0 %422
  %v425 = vmul.f32 %v407, %v423
  %427 = vrot.lane.b32.xlu0 %v425, 32
  %v428 = vpop.permute.xlu0 %427
  %s430 = scalar_lea.vmem [#allocation3], 16
  %431 = vst.msk [vmem:[%s430] sm:$0xff] %vm124, %v428
  %s432 = scalar_lea.vmem [#allocation2], 24
  %v433 = vld [vmem:[%s432] sm:$0xff]
  %v434 = vsel %vm124, %v428, 0
  %436 = vmatprep.subr.mxu0 0.0
  %437 = vmatpush1.msra.mxu0 %v26
  %438 = vmatprep.subr.mxu0 0.0
  %439 = vmatpush1.msra.mxu0 %v27
  %440 = vmatprep.subr.mxu0 0.0
  %441 = vmatpush1.msra.mxu0 %v28
  %442 = vmatprep.subr.mxu0 0.0
  %443 = vmatpush1.msra.mxu0 %v29
  %444 = vmatprep.subr.mxu0 0.0
  %445 = vmatpush1.msra.mxu0 0.0
  %446 = vmatprep.subr.mxu0 0.0
  %447 = vmatpush1.msra.mxu0 0.0
  %448 = vmatprep.subr.mxu0 0.0
  %449 = vmatpush1.msra.mxu0 0.0
  %450 = vmatprep.subr.mxu0 0.0
  %451 = vmatpush1.msra.mxu0 0.0
  %452 = vmatprep.subr.mxu0 0.0
  %453 = vmatpush1.msra.mxu0 0.0
  %454 = vmatprep.subr.mxu0 0.0
  %455 = vmatpush1.msra.mxu0 0.0
  %456 = vmatprep.subr.mxu0 0.0
  %457 = vmatpush1.msra.mxu0 0.0
  %458 = vmatprep.subr.mxu0 0.0
  %459 = vmatpush1.msra.mxu0 0.0
  %460 = vmatprep.subr.mxu0 0.0
  %461 = vmatpush1.msra.mxu0 0.0
  %462 = vmatprep.subr.mxu0 0.0
  %463 = vmatpush1.msra.mxu0 0.0
  %464 = vmatprep.subr.mxu0 0.0
  %465 = vmatpush1.msra.mxu0 0.0
  %466 = vmatprep.subr.mxu0 0.0
  %467 = vmatpush1.msra.mxu0 0.0
  %468 = vmatprep.subr.mxu0 0.0
  %469 = vmatpush1.msra.mxu0 0.0
  %470 = vmatprep.subr.mxu0 0.0
  %471 = vmatpush1.msra.mxu0 0.0
  %472 = vmatprep.subr.mxu0 0.0
  %473 = vmatpush1.msra.mxu0 0.0
  %474 = vmatprep.subr.mxu0 0.0
  %475 = vmatpush1.msra.mxu0 0.0
  %476 = vmatprep.subr.mxu0 0.0
  %477 = vmatpush1.msra.mxu0 0.0
  %478 = vmatprep.subr.mxu0 0.0
  %479 = vmatpush1.msra.mxu0 0.0
  %480 = vmatprep.subr.mxu0 0.0
  %481 = vmatpush1.msra.mxu0 0.0
  %482 = vmatprep.subr.mxu0 0.0
  %483 = vmatpush1.msra.mxu0 0.0
  %484 = vmatprep.subr.mxu0 0.0
  %485 = vmatpush1.msra.mxu0 0.0
  %486 = vmatprep.subr.mxu0 0.0
  %487 = vmatpush1.msra.mxu0 0.0
  %488 = vmatprep.subr.mxu0 0.0
  %489 = vmatpush1.msra.mxu0 0.0
  %490 = vmatprep.subr.mxu0 0.0
  %491 = vmatpush1.msra.mxu0 0.0
  %492 = vmatprep.subr.mxu0 0.0
  %493 = vmatpush1.msra.mxu0 0.0
  %494 = vmatprep.subr.mxu0 0.0
  %495 = vmatpush1.msra.mxu0 0.0
  %496 = vmatprep.subr.mxu0 0.0
  %497 = vmatpush1.msra.mxu0 0.0
  %498 = vmatprep.subr.mxu0 0.0
  %499 = vmatpush1.msra.mxu0 0.0
  %500 = vmatprep.mubr.f32.mxu0 0.0
  %501 = vmatmul.mubr.f32.gmra.mrb[0].mxu0 %v434
  %v502 = vpop.f32.mrb[0].mxu0
  %v503 = vadd.f32 0.0, %v502
  %v504 = vpop.f32.mrb[0].mxu0
  %505 = vdwg.mxu0
  %v506 = vadd.f32 %v433, %v503
  %v507 = vmul.f32 %v506, 0.5
  %v508 = vtanh.pop %v507
  %v509 = vmul.f32 %v508, 0.5
  %v510 = vadd.f32 %v509, 0.5
  %v511 = vtanh.pop %v506
  %v512 = vmul.f32 %v510, %v419
  %514 = vrot.lane.b32.xlu0 %v511, 64
  %v515 = vpop.permute.xlu0 %514
  %v517 = vmul.f32 %v510, %v515
  %519 = vrot.lane.b32.xlu0 %v517, 32
  %v520 = vpop.permute.xlu0 %519
  %v522 = vadd.f32 %v512, %v520
  %v523 = vtanh.pop %v522
  %525 = vrot.lane.b32.xlu0 %v523, 64
  %v526 = vpop.permute.xlu0 %525
  %v528 = vmul.f32 %v510, %v526
  %530 = vrot.lane.b32.xlu0 %v528, 32
  %v531 = vpop.permute.xlu0 %530
  %s533 = scalar_lea.vmem [#allocation3], 24
  %534 = vst.msk [vmem:[%s533] sm:$0xff] %vm124, %v531
  %s535 = scalar_lea.vmem [#allocation2], 32
  %v536 = vld [vmem:[%s535] sm:$0xff]
  %v537 = vsel %vm124, %v531, 0
  %539 = vmatprep.subr.mxu0 0.0
  %540 = vmatpush1.msra.mxu0 %v26
  %541 = vmatprep.subr.mxu0 0.0
  %542 = vmatpush1.msra.mxu0 %v27
  %543 = vmatprep.subr.mxu0 0.0
  %544 = vmatpush1.msra.mxu0 %v28
  %545 = vmatprep.subr.mxu0 0.0
  %546 = vmatpush1.msra.mxu0 %v29
  %547 = vmatprep.subr.mxu0 0.0
  %548 = vmatpush1.msra.mxu0 0.0
  %549 = vmatprep.subr.mxu0 0.0
  %550 = vmatpush1.msra.mxu0 0.0
  %551 = vmatprep.subr.mxu0 0.0
  %552 = vmatpush1.msra.mxu0 0.0
  %553 = vmatprep.subr.mxu0 0.0
  %554 = vmatpush1.msra.mxu0 0.0
  %555 = vmatprep.subr.mxu0 0.0
  %556 = vmatpush1.msra.mxu0 0.0
  %557 = vmatprep.subr.mxu0 0.0
  %558 = vmatpush1.msra.mxu0 0.0
  %559 = vmatprep.subr.mxu0 0.0
  %560 = vmatpush1.msra.mxu0 0.0
  %561 = vmatprep.subr.mxu0 0.0
  %562 = vmatpush1.msra.mxu0 0.0
  %563 = vmatprep.subr.mxu0 0.0
  %564 = vmatpush1.msra.mxu0 0.0
  %565 = vmatprep.subr.mxu0 0.0
  %566 = vmatpush1.msra.mxu0 0.0
  %567 = vmatprep.subr.mxu0 0.0
  %568 = vmatpush1.msra.mxu0 0.0
  %569 = vmatprep.subr.mxu0 0.0
  %570 = vmatpush1.msra.mxu0 0.0
  %571 = vmatprep.subr.mxu0 0.0
  %572 = vmatpush1.msra.mxu0 0.0
  %573 = vmatprep.subr.mxu0 0.0
  %574 = vmatpush1.msra.mxu0 0.0
  %575 = vmatprep.subr.mxu0 0.0
  %576 = vmatpush1.msra.mxu0 0.0
  %577 = vmatprep.subr.mxu0 0.0
  %578 = vmatpush1.msra.mxu0 0.0
  %579 = vmatprep.subr.mxu0 0.0
  %580 = vmatpush1.msra.mxu0 0.0
  %581 = vmatprep.subr.mxu0 0.0
  %582 = vmatpush1.msra.mxu0 0.0
  %583 = vmatprep.subr.mxu0 0.0
  %584 = vmatpush1.msra.mxu0 0.0
  %585 = vmatprep.subr.mxu0 0.0
  %586 = vmatpush1.msra.mxu0 0.0
  %587 = vmatprep.subr.mxu0 0.0
  %588 = vmatpush1.msra.mxu0 0.0
  %589 = vmatprep.subr.mxu0 0.0
  %590 = vmatpush1.msra.mxu0 0.0
  %591 = vmatprep.subr.mxu0 0.0
  %592 = vmatpush1.msra.mxu0 0.0
  %593 = vmatprep.subr.mxu0 0.0
  %594 = vmatpush1.msra.mxu0 0.0
  %595 = vmatprep.subr.mxu0 0.0
  %596 = vmatpush1.msra.mxu0 0.0
  %597 = vmatprep.subr.mxu0 0.0
  %598 = vmatpush1.msra.mxu0 0.0
  %599 = vmatprep.subr.mxu0 0.0
  %600 = vmatpush1.msra.mxu0 0.0
  %601 = vmatprep.subr.mxu0 0.0
  %602 = vmatpush1.msra.mxu0 0.0
  %603 = vmatprep.mubr.f32.mxu0 0.0
  %604 = vmatmul.mubr.f32.gmra.mrb[0].mxu0 %v537
  %v605 = vpop.f32.mrb[0].mxu0
  %v606 = vadd.f32 0.0, %v605
  %v607 = vpop.f32.mrb[0].mxu0
  %608 = vdwg.mxu0
  %v609 = vadd.f32 %v536, %v606
  %v610 = vmul.f32 %v609, 0.5
  %v611 = vtanh.pop %v610
  %v612 = vmul.f32 %v611, 0.5
  %v613 = vadd.f32 %v612, 0.5
  %v614 = vtanh.pop %v609
  %v615 = vmul.f32 %v613, %v522
  %617 = vrot.lane.b32.xlu0 %v614, 64
  %v618 = vpop.permute.xlu0 %617
  %v620 = vmul.f32 %v613, %v618
  %622 = vrot.lane.b32.xlu0 %v620, 32
  %v623 = vpop.permute.xlu0 %622
  %v625 = vadd.f32 %v615, %v623
  %v626 = vtanh.pop %v625
  %628 = vrot.lane.b32.xlu0 %v626, 64
  %v629 = vpop.permute.xlu0 %628
  %v631 = vmul.f32 %v613, %v629
  %633 = vrot.lane.b32.xlu0 %v631, 32
  %v634 = vpop.permute.xlu0 %633
  %s636 = scalar_lea.vmem [#allocation3], 32
  %637 = vst.msk [vmem:[%s636] sm:$0xff] %vm124, %v634
  %s638 = scalar_lea.vmem [#allocation2], 40
  %v639 = vld [vmem:[%s638] sm:$0xff]
  %v640 = vsel %vm124, %v634, 0
  %642 = vmatprep.subr.mxu0 0.0
  %643 = vmatpush1.msra.mxu0 %v26
  %644 = vmatprep.subr.mxu0 0.0
  %645 = vmatpush1.msra.mxu0 %v27
  %646 = vmatprep.subr.mxu0 0.0
  %647 = vmatpush1.msra.mxu0 %v28
  %648 = vmatprep.subr.mxu0 0.0
  %649 = vmatpush1.msra.mxu0 %v29
  %650 = vmatprep.subr.mxu0 0.0
  %651 = vmatpush1.msra.mxu0 0.0
  %652 = vmatprep.subr.mxu0 0.0
  %653 = vmatpush1.msra.mxu0 0.0
  %654 = vmatprep.subr.mxu0 0.0
  %655 = vmatpush1.msra.mxu0 0.0
  %656 = vmatprep.subr.mxu0 0.0
  %657 = vmatpush1.msra.mxu0 0.0
  %658 = vmatprep.subr.mxu0 0.0
  %659 = vmatpush1.msra.mxu0 0.0
  %660 = vmatprep.subr.mxu0 0.0
  %661 = vmatpush1.msra.mxu0 0.0
  %662 = vmatprep.subr.mxu0 0.0
  %663 = vmatpush1.msra.mxu0 0.0
  %664 = vmatprep.subr.mxu0 0.0
  %665 = vmatpush1.msra.mxu0 0.0
  %666 = vmatprep.subr.mxu0 0.0
  %667 = vmatpush1.msra.mxu0 0.0
  %668 = vmatprep.subr.mxu0 0.0
  %669 = vmatpush1.msra.mxu0 0.0
  %670 = vmatprep.subr.mxu0 0.0
  %671 = vmatpush1.msra.mxu0 0.0
  %672 = vmatprep.subr.mxu0 0.0
  %673 = vmatpush1.msra.mxu0 0.0
  %674 = vmatprep.subr.mxu0 0.0
  %675 = vmatpush1.msra.mxu0 0.0
  %676 = vmatprep.subr.mxu0 0.0
  %677 = vmatpush1.msra.mxu0 0.0
  %678 = vmatprep.subr.mxu0 0.0
  %679 = vmatpush1.msra.mxu0 0.0
  %680 = vmatprep.subr.mxu0 0.0
  %681 = vmatpush1.msra.mxu0 0.0
  %682 = vmatprep.subr.mxu0 0.0
  %683 = vmatpush1.msra.mxu0 0.0
  %684 = vmatprep.subr.mxu0 0.0
  %685 = vmatpush1.msra.mxu0 0.0
  %686 = vmatprep.subr.mxu0 0.0
  %687 = vmatpush1.msra.mxu0 0.0
  %688 = vmatprep.subr.mxu0 0.0
  %689 = vmatpush1.msra.mxu0 0.0
  %690 = vmatprep.subr.mxu0 0.0
  %691 = vmatpush1.msra.mxu0 0.0
  %692 = vmatprep.subr.mxu0 0.0
  %693 = vmatpush1.msra.mxu0 0.0
  %694 = vmatprep.subr.mxu0 0.0
  %695 = vmatpush1.msra.mxu0 0.0
  %696 = vmatprep.subr.mxu0 0.0
  %697 = vmatpush1.msra.mxu0 0.0
  %698 = vmatprep.subr.mxu0 0.0
  %699 = vmatpush1.msra.mxu0 0.0
  %700 = vmatprep.subr.mxu0 0.0
  %701 = vmatpush1.msra.mxu0 0.0
  %702 = vmatprep.subr.mxu0 0.0
  %703 = vmatpush1.msra.mxu0 0.0
  %704 = vmatprep.subr.mxu0 0.0
  %705 = vmatpush1.msra.mxu0 0.0
  %706 = vmatprep.mubr.f32.mxu0 0.0
  %707 = vmatmul.mubr.f32.gmra.mrb[0].mxu0 %v640
  %v708 = vpop.f32.mrb[0].mxu0
  %v709 = vadd.f32 0.0, %v708
  %v710 = vpop.f32.mrb[0].mxu0
  %711 = vdwg.mxu0
  %v712 = vadd.f32 %v639, %v709
  %v713 = vmul.f32 %v712, 0.5
  %v714 = vtanh.pop %v713
  %v715 = vmul.f32 %v714, 0.5
  %v716 = vadd.f32 %v715, 0.5
  %v717 = vtanh.pop %v712
  %v718 = vmul.f32 %v716, %v625
  %720 = vrot.lane.b32.xlu0 %v717, 64
  %v721 = vpop.permute.xlu0 %720
  %v723 = vmul.f32 %v716, %v721
  %725 = vrot.lane.b32.xlu0 %v723, 32
  %v726 = vpop.permute.xlu0 %725
  %v728 = vadd.f32 %v718, %v726
  %v729 = vtanh.pop %v728
  %731 = vrot.lane.b32.xlu0 %v729, 64
  %v732 = vpop.permute.xlu0 %731
  %v734 = vmul.f32 %v716, %v732
  %736 = vrot.lane.b32.xlu0 %v734, 32
  %v737 = vpop.permute.xlu0 %736
  %s739 = scalar_lea.vmem [#allocation3], 40
  %740 = vst.msk [vmem:[%s739] sm:$0xff] %vm124, %v737
  %s741 = scalar_lea.vmem [#allocation2], 48
  %v742 = vld [vmem:[%s741] sm:$0xff]
  %v743 = vsel %vm124, %v737, 0
  %745 = vmatprep.subr.mxu0 0.0
  %746 = vmatpush1.msra.mxu0 %v26
  %747 = vmatprep.subr.mxu0 0.0
  %748 = vmatpush1.msra.mxu0 %v27
  %749 = vmatprep.subr.mxu0 0.0
  %750 = vmatpush1.msra.mxu0 %v28
  %751 = vmatprep.subr.mxu0 0.0
  %752 = vmatpush1.msra.mxu0 %v29
  %753 = vmatprep.subr.mxu0 0.0
  %754 = vmatpush1.msra.mxu0 0.0
  %755 = vmatprep.subr.mxu0 0.0
  %756 = vmatpush1.msra.mxu0 0.0
  %757 = vmatprep.subr.mxu0 0.0
  %758 = vmatpush1.msra.mxu0 0.0
  %759 = vmatprep.subr.mxu0 0.0
  %760 = vmatpush1.msra.mxu0 0.0
  %761 = vmatprep.subr.mxu0 0.0
  %762 = vmatpush1.msra.mxu0 0.0
  %763 = vmatprep.subr.mxu0 0.0
  %764 = vmatpush1.msra.mxu0 0.0
  %765 = vmatprep.subr.mxu0 0.0
  %766 = vmatpush1.msra.mxu0 0.0
  %767 = vmatprep.subr.mxu0 0.0
  %768 = vmatpush1.msra.mxu0 0.0
  %769 = vmatprep.subr.mxu0 0.0
  %770 = vmatpush1.msra.mxu0 0.0
  %771 = vmatprep.subr.mxu0 0.0
  %772 = vmatpush1.msra.mxu0 0.0
  %773 = vmatprep.subr.mxu0 0.0
  %774 = vmatpush1.msra.mxu0 0.0
  %775 = vmatprep.subr.mxu0 0.0
  %776 = vmatpush1.msra.mxu0 0.0
  %777 = vmatprep.subr.mxu0 0.0
  %778 = vmatpush1.msra.mxu0 0.0
  %779 = vmatprep.subr.mxu0 0.0
  %780 = vmatpush1.msra.mxu0 0.0
  %781 = vmatprep.subr.mxu0 0.0
  %782 = vmatpush1.msra.mxu0 0.0
  %783 = vmatprep.subr.mxu0 0.0
  %784 = vmatpush1.msra.mxu0 0.0
  %785 = vmatprep.subr.mxu0 0.0
  %786 = vmatpush1.msra.mxu0 0.0
  %787 = vmatprep.subr.mxu0 0.0
  %788 = vmatpush1.msra.mxu0 0.0
  %789 = vmatprep.subr.mxu0 0.0
  %790 = vmatpush1.msra.mxu0 0.0
  %791 = vmatprep.subr.mxu0 0.0
  %792 = vmatpush1.msra.mxu0 0.0
  %793 = vmatprep.subr.mxu0 0.0
  %794 = vmatpush1.msra.mxu0 0.0
  %795 = vmatprep.subr.mxu0 0.0
  %796 = vmatpush1.msra.mxu0 0.0
  %797 = vmatprep.subr.mxu0 0.0
  %798 = vmatpush1.msra.mxu0 0.0
  %799 = vmatprep.subr.mxu0 0.0
  %800 = vmatpush1.msra.mxu0 0.0
  %801 = vmatprep.subr.mxu0 0.0
  %802 = vmatpush1.msra.mxu0 0.0
  %803 = vmatprep.subr.mxu0 0.0
  %804 = vmatpush1.msra.mxu0 0.0
  %805 = vmatprep.subr.mxu0 0.0
  %806 = vmatpush1.msra.mxu0 0.0
  %807 = vmatprep.subr.mxu0 0.0
  %808 = vmatpush1.msra.mxu0 0.0
  %809 = vmatprep.mubr.f32.mxu0 0.0
  %810 = vmatmul.mubr.f32.gmra.mrb[0].mxu0 %v743
  %v811 = vpop.f32.mrb[0].mxu0
  %v812 = vadd.f32 0.0, %v811
  %v813 = vpop.f32.mrb[0].mxu0
  %814 = vdwg.mxu0
  %v815 = vadd.f32 %v742, %v812
  %v816 = vmul.f32 %v815, 0.5
  %v817 = vtanh.pop %v816
  %v818 = vmul.f32 %v817, 0.5
  %v819 = vadd.f32 %v818, 0.5
  %v820 = vtanh.pop %v815
  %v821 = vmul.f32 %v819, %v728
  %823 = vrot.lane.b32.xlu0 %v820, 64
  %v824 = vpop.permute.xlu0 %823
  %v826 = vmul.f32 %v819, %v824
  %828 = vrot.lane.b32.xlu0 %v826, 32
  %v829 = vpop.permute.xlu0 %828
  %v831 = vadd.f32 %v821, %v829
  %v832 = vtanh.pop %v831
  %834 = vrot.lane.b32.xlu0 %v832, 64
  %v835 = vpop.permute.xlu0 %834
  %v837 = vmul.f32 %v819, %v835
  %839 = vrot.lane.b32.xlu0 %v837, 32
  %v840 = vpop.permute.xlu0 %839
  %s842 = scalar_lea.vmem [#allocation3], 48
  %843 = vst.msk [vmem:[%s842] sm:$0xff] %vm124, %v840
  %s844 = scalar_lea.vmem [#allocation2], 56
  %v845 = vld [vmem:[%s844] sm:$0xff]
  %v846 = vsel %vm124, %v840, 0
  %848 = vmatprep.subr.mxu0 0.0
  %849 = vmatpush1.msra.mxu0 %v26
  %850 = vmatprep.subr.mxu0 0.0
  %851 = vmatpush1.msra.mxu0 %v27
  %852 = vmatprep.subr.mxu0 0.0
  %853 = vmatpush1.msra.mxu0 %v28
  %854 = vmatprep.subr.mxu0 0.0
  %855 = vmatpush1.msra.mxu0 %v29
  %856 = vmatprep.subr.mxu0 0.0
  %857 = vmatpush1.msra.mxu0 0.0
  %858 = vmatprep.subr.mxu0 0.0
  %859 = vmatpush1.msra.mxu0 0.0
  %860 = vmatprep.subr.mxu0 0.0
  %861 = vmatpush1.msra.mxu0 0.0
  %862 = vmatprep.subr.mxu0 0.0
  %863 = vmatpush1.msra.mxu0 0.0
  %864 = vmatprep.subr.mxu0 0.0
  %865 = vmatpush1.msra.mxu0 0.0
  %866 = vmatprep.subr.mxu0 0.0
  %867 = vmatpush1.msra.mxu0 0.0
  %868 = vmatprep.subr.mxu0 0.0
  %869 = vmatpush1.msra.mxu0 0.0
  %870 = vmatprep.subr.mxu0 0.0
  %871 = vmatpush1.msra.mxu0 0.0
  %872 = vmatprep.subr.mxu0 0.0
  %873 = vmatpush1.msra.mxu0 0.0
  %874 = vmatprep.subr.mxu0 0.0
  %875 = vmatpush1.msra.mxu0 0.0
  %876 = vmatprep.subr.mxu0 0.0
  %877 = vmatpush1.msra.mxu0 0.0
  %878 = vmatprep.subr.mxu0 0.0
  %879 = vmatpush1.msra.mxu0 0.0
  %880 = vmatprep.subr.mxu0 0.0
  %881 = vmatpush1.msra.mxu0 0.0
  %882 = vmatprep.subr.mxu0 0.0
  %883 = vmatpush1.msra.mxu0 0.0
  %884 = vmatprep.subr.mxu0 0.0
  %885 = vmatpush1.msra.mxu0 0.0
  %886 = vmatprep.subr.mxu0 0.0
  %887 = vmatpush1.msra.mxu0 0.0
  %888 = vmatprep.subr.mxu0 0.0
  %889 = vmatpush1.msra.mxu0 0.0
  %890 = vmatprep.subr.mxu0 0.0
  %891 = vmatpush1.msra.mxu0 0.0
  %892 = vmatprep.subr.mxu0 0.0
  %893 = vmatpush1.msra.mxu0 0.0
  %894 = vmatprep.subr.mxu0 0.0
  %895 = vmatpush1.msra.mxu0 0.0
  %896 = vmatprep.subr.mxu0 0.0
  %897 = vmatpush1.msra.mxu0 0.0
  %898 = vmatprep.subr.mxu0 0.0
  %899 = vmatpush1.msra.mxu0 0.0
  %900 = vmatprep.subr.mxu0 0.0
  %901 = vmatpush1.msra.mxu0 0.0
  %902 = vmatprep.subr.mxu0 0.0
  %903 = vmatpush1.msra.mxu0 0.0
  %904 = vmatprep.subr.mxu0 0.0
  %905 = vmatpush1.msra.mxu0 0.0
  %906 = vmatprep.subr.mxu0 0.0
  %907 = vmatpush1.msra.mxu0 0.0
  %908 = vmatprep.subr.mxu0 0.0
  %909 = vmatpush1.msra.mxu0 0.0
  %910 = vmatprep.subr.mxu0 0.0
  %911 = vmatpush1.msra.mxu0 0.0
  %912 = vmatprep.mubr.f32.mxu0 0.0
  %913 = vmatmul.mubr.f32.gmra.mrb[0].mxu0 %v846
  %v914 = vpop.f32.mrb[0].mxu0
  %v915 = vadd.f32 0.0, %v914
  %v916 = vpop.f32.mrb[0].mxu0
  %917 = vdwg.mxu0
  %v918 = vadd.f32 %v845, %v915
  %v919 = vmul.f32 %v918, 0.5
  %v920 = vtanh.pop %v919
  %v921 = vmul.f32 %v920, 0.5
  %v922 = vadd.f32 %v921, 0.5
  %v923 = vtanh.pop %v918
  %v924 = vmul.f32 %v922, %v831
  %926 = vrot.lane.b32.xlu0 %v923, 64
  %v927 = vpop.permute.xlu0 %926
  %v929 = vmul.f32 %v922, %v927
  %931 = vrot.lane.b32.xlu0 %v929, 32
  %v932 = vpop.permute.xlu0 %931
  %v934 = vadd.f32 %v924, %v932
  %v935 = vtanh.pop %v934
  %937 = vrot.lane.b32.xlu0 %v935, 64
  %v938 = vpop.permute.xlu0 %937
  %v940 = vmul.f32 %v922, %v938
  %942 = vrot.lane.b32.xlu0 %v940, 32
  %v943 = vpop.permute.xlu0 %942
  %s945 = scalar_lea.vmem [#allocation3], 56
  %946 = vst.msk [vmem:[%s945] sm:$0xff] %vm124, %v943
  %v947 = vld [vmem:[%s4] sm:$0x1]
  %v948 = vld [vmem:[#allocation3] sm:$0xff]
  %v949 = vld [vmem:[#allocation3 + $0x8] sm:$0xff]
  %v950 = vld [vmem:[#allocation3 + $0x10] sm:$0xff]
  %v951 = vld [vmem:[#allocation3 + $0x18] sm:$0xff]
  %v952 = vld [vmem:[#allocation3 + $0x20] sm:$0xff]
  %v953 = vld [vmem:[#allocation3 + $0x28] sm:$0xff]
  %v954 = vld [vmem:[#allocation3 + $0x30] sm:$0xff]
  %v955 = vld [vmem:[#allocation3 + $0x38] sm:$0xff]
  %v957 = vlaneseq
  %v958 = vshrl.u32 %v957, 7
  %v959 = vsub.s32 0, %v958
  %v960 = vrot.slane %v947, %v959
  %v962 = vmul.f32 %v948, %v960
  %v963 = vmul.f32 %v949, %v960
  %v964 = vmul.f32 %v950, %v960
  %v965 = vmul.f32 %v951, %v960
  %v966 = vmul.f32 %v952, %v960
  %v967 = vmul.f32 %v953, %v960
  %v968 = vmul.f32 %v954, %v960
  %v969 = vmul.f32 %v955, %v960
  %v970 = vsel %vm124, %v962, 0.0
  %971 = vadd.xlane.f32.xlu0 %v970
  %v972 = vpop.xlane.xlu0 %971
  %v973 = vsel %vm124, %v963, 0.0
  %974 = vadd.xlane.f32.xlu0 %v973
  %v975 = vpop.xlane.xlu0 %974
  %v976 = vsel %vm124, %v964, 0.0
  %977 = vadd.xlane.f32.xlu0 %v976
  %v978 = vpop.xlane.xlu0 %977
  %v979 = vsel %vm124, %v965, 0.0
  %980 = vadd.xlane.f32.xlu0 %v979
  %v981 = vpop.xlane.xlu0 %980
  %v982 = vsel %vm124, %v966, 0.0
  %983 = vadd.xlane.f32.xlu0 %v982
  %v984 = vpop.xlane.xlu0 %983
  %v985 = vsel %vm124, %v967, 0.0
  %986 = vadd.xlane.f32.xlu0 %v985
  %v987 = vpop.xlane.xlu0 %986
  %v988 = vsel %vm124, %v968, 0.0
  %989 = vadd.xlane.f32.xlu0 %v988
  %v990 = vpop.xlane.xlu0 %989
  %v991 = vsel %vm124, %v969, 0.0
  %992 = vadd.xlane.f32.xlu0 %v991
  %v993 = vpop.xlane.xlu0 %992
  %s994 = sld [smem:[#allocation4]]
  %v995 = vstv %s994
  %v996 = vadd.f32 %v972, %v995
  %v997 = vadd.f32 %v975, %v995
  %v998 = vadd.f32 %v978, %v995
  %v999 = vadd.f32 %v981, %v995
  %v1000 = vadd.f32 %v984, %v995
  %v1001 = vadd.f32 %v987, %v995
  %v1002 = vadd.f32 %v990, %v995
  %v1003 = vadd.f32 %v993, %v995
  %v1012 = vlaneseq
  %v1013 = vand.u32 %v1012, 127
  %v1014 = vlaneseq
  %v1015 = vshrl.u32 %v1014, 7
  %v1016 = vsub.s32 %v1013, %v1015
  %v1017 = vrot.slane %v996, %v1016
  %v1018 = vlaneseq
  %v1019 = vshrl.u32 %v1018, 7
  %v1020 = vsub.s32 %v1013, %v1019
  %v1021 = vrot.slane %v997, %v1020
  %v1022 = vlaneseq
  %v1023 = vshrl.u32 %v1022, 7
  %v1024 = vsub.s32 %v1013, %v1023
  %v1025 = vrot.slane %v998, %v1024
  %v1026 = vlaneseq
  %v1027 = vshrl.u32 %v1026, 7
  %v1028 = vsub.s32 %v1013, %v1027
  %v1029 = vrot.slane %v999, %v1028
  %v1030 = vlaneseq
  %v1031 = vshrl.u32 %v1030, 7
  %v1032 = vsub.s32 %v1013, %v1031
  %v1033 = vrot.slane %v1000, %v1032
  %v1034 = vlaneseq
  %v1035 = vshrl.u32 %v1034, 7
  %v1036 = vsub.s32 %v1013, %v1035
  %v1037 = vrot.slane %v1001, %v1036
  %v1038 = vlaneseq
  %v1039 = vshrl.u32 %v1038, 7
  %v1040 = vsub.s32 %v1013, %v1039
  %v1041 = vrot.slane %v1002, %v1040
  %v1042 = vlaneseq
  %v1043 = vshrl.u32 %v1042, 7
  %v1044 = vsub.s32 %v1013, %v1043
  %v1045 = vrot.slane %v1003, %v1044
  %vm1046 = vcmask 1041409
  %v1047 = vsel %vm1046, %v1021, %v1017
  %vm1048 = vcmask 1042434
  %v1049 = vsel %vm1048, %v1025, %v1047
  %vm1050 = vcmask 1043459
  %v1051 = vsel %vm1050, %v1029, %v1049
  %vm1052 = vcmask 1044484
  %v1053 = vsel %vm1052, %v1033, %v1051
  %vm1054 = vcmask 1045509
  %v1055 = vsel %vm1054, %v1037, %v1053
  %vm1056 = vcmask 1046534
  %v1057 = vsel %vm1056, %v1041, %v1055
  %vm1058 = vcmask 1047559
  %v1059 = vsel %vm1058, %v1045, %v1057
  %vm1061 = vcmask 64512
  %1062 = vst.msk [vmem:[%s6] sm:$0xff] %vm1061, %v1059
  // Predicated region
  $region26: #{lstm_forward.1} parent=0 // pred_check
    _
  $region27: #{lstm_forward.1} parent=0 // pred_check_branch
    %1064 = sbr.rel (0) target = $region29
  $region28: #{lstm_forward.1} parent=0 // pred_region
    _
  $region29: #{lstm_forward.1} parent=0 // pred_fallthru
    _
  // Predicated region
  $region30: #{lstm_forward.1} parent=0 // pred_check
    _
  $region31: #{lstm_forward.1} parent=0 // pred_check_branch
    %1066 = sbr.rel (0) target = $region33
  $region32: #{lstm_forward.1} parent=0 // pred_region
    _
  $region33: #{lstm_forward.1} parent=0 // pred_fallthru
    _

</llo_original>
